<compile_context>
chip_gen: v5e
topology: v5e:2x2
jax: 0.10.0
libtpu: 0.0.40
codegen_flags: <defaults>
</compile_context>

<pallas_src>
import jax
import jax.numpy as jnp
from jax.experimental import pallas as pl
from jax.experimental.pallas import tpu as pltpu

_LANE = 128


def _gtconv_kernel(w_ref, a_ref, o_ref):
    # w_ref: (C_out, C_in)   softmax-normalized weights, resident in SMEM.
    # a_ref: (C_in, BR, 128) lane-dense spatial slab per input channel (VMEM).
    # o_ref: (C_out, BR, 128) lane-dense spatial slab per output channel (VMEM).
    c_out = o_ref.shape[0]
    c_in = a_ref.shape[0]

    # Load each input-channel slab once; keep C_out running sums updated with
    # scalar-broadcast MACs on the VPU (no MXU needed at these shapes).
    a_c = a_ref[0]
    accs = [w_ref[o, 0] * a_c for o in range(c_out)]
    for c in range(1, c_in):
        a_c = a_ref[c]
        for o in range(c_out):
            accs[o] = accs[o] + w_ref[o, c] * a_c
    for o in range(c_out):
        o_ref[o] = accs[o].astype(o_ref.dtype)


def gtconv_forward(A, weight, *, block_rows=512):
    """GTConv forward.

    A:      (C_in, N, M) float array (stack of adjacency matrices).
    weight: (C_out, C_in, 1, 1) float array.
    Returns (C_out, N, M) float32.
    """
    c_in, n, m = A.shape
    c_out = weight.shape[0]
    nn = n * m

    # Softmax over in_channels (dim=1 of the (C_out, C_in, 1, 1) weight),
    # hoisted out of the kernel: it is a tiny (C_out, C_in) op.
    w_soft = jax.nn.softmax(weight.reshape(c_out, c_in).astype(jnp.float32), axis=1)

    # Lane-dense layout: spatial plane -> (rows, 128), rows padded so the block
    # divides evenly (tail handled by zero padding + final slice).
    rows = pl.cdiv(nn, _LANE)
    br = max(8, min(int(block_rows), ((rows + 7) // 8) * 8))
    br = ((br + 7) // 8) * 8  # keep the sublane dim a multiple of 8
    rows_pad = pl.cdiv(rows, br) * br
    nn_pad = rows_pad * _LANE

    a_flat = A.reshape(c_in, nn).astype(jnp.float32)
    if nn_pad != nn:
        a_flat = jnp.pad(a_flat, ((0, 0), (0, nn_pad - nn)))
    a3 = a_flat.reshape(c_in, rows_pad, _LANE)

    grid = (rows_pad // br,)

    # Scoped VMEM sized to double-buffered in+out tiles, with headroom.
    tile_bytes = (c_in + c_out) * br * _LANE * 4
    vmem_limit = min(64 << 20, 2 * tile_bytes + (4 << 20))

    out3 = pl.pallas_call(
        _gtconv_kernel,
        out_shape=jax.ShapeDtypeStruct((c_out, rows_pad, _LANE), jnp.float32),
        grid=grid,
        in_specs=[
            # Tiny softmaxed weight table in SMEM for cheap scalar reads.
            pl.BlockSpec(memory_space=pltpu.MemorySpace.SMEM),
            # One large lane-dense spatial slab per grid step, all channels.
            pl.BlockSpec((c_in, br, _LANE), lambda j: (0, j, 0)),
        ],
        out_specs=pl.BlockSpec((c_out, br, _LANE), lambda j: (0, j, 0)),
        compiler_params=pltpu.CompilerParams(
            dimension_semantics=("parallel",),
            vmem_limit_bytes=vmem_limit,
        ),
    )(w_soft, a3)

    return out3.reshape(c_out, nn_pad)[:, :nn].reshape(c_out, n, m)


def gtconv_reference(A, weight):
    c_out, c_in = weight.shape[0], weight.shape[1]
    w_soft = jax.nn.softmax(weight.reshape(c_out, c_in).astype(jnp.float32), axis=1)
    # out[o, i, j] = sum_c w_soft[o, c] * A[c, i, j]   (pure f32 VPU math)
    return jnp.sum(A[None].astype(jnp.float32) * w_soft[:, :, None, None], axis=1)


if __name__ == "__main__":
    key = jax.random.PRNGKey(0)
    k1, k2, k3 = jax.random.split(key, 3)

    in_channels = 4
    out_channels = 2

    # Deterministic parameter init per GTConv.reset_parameters:
    #   weight filled with constant 0.1, bias=None, scale=0.1 (unused in forward).
    weight = jnp.full((out_channels, in_channels, 1, 1), 0.1, dtype=jnp.float32)

    # Small shape consistent with the module: stack of 16x16 adjacency matrices.
    N = 16
    A_small = jax.random.uniform(k1, (in_channels, N, N), dtype=jnp.float32)
    out_small = jax.block_until_ready(gtconv_forward(A_small, weight))
    ref_small = gtconv_reference(A_small, weight)
    assert out_small.shape == (out_channels, N, N)
    assert jnp.allclose(out_small, ref_small, atol=1e-5, rtol=1e-5), "small mismatch"

    # A larger case with a non-uniform weight to exercise multi-step grid,
    # tail padding, and the softmax-weighted mix non-trivially.
    N2 = 384  # 147456 spatial elems -> 1152 rows of 128 lanes -> 3 grid steps
    A_big = jax.random.uniform(k2, (in_channels, N2, N2), dtype=jnp.float32)
    w_big = jax.random.normal(k3, (out_channels, in_channels, 1, 1), dtype=jnp.float32)
    out_big = jax.block_until_ready(gtconv_forward(A_big, w_big))
    ref_big = gtconv_reference(A_big, w_big)
    assert out_big.shape == (out_channels, N2, N2)
    assert jnp.allclose(out_big, ref_big, atol=1e-5, rtol=1e-5), "big mismatch"

    print("KERNEL_OK")
</pallas_src>

<mosaic_0001>
module attributes {stable_mosaic.version = 11 : i64} {
  func.func @_gtconv_kernel(%arg0: i32, %arg1: memref<2x4xf32, #tpu.memory_space<smem>>, %arg2: memref<4x8x128xf32, #tpu.memory_space<vmem>>, %arg3: memref<2x8x128xf32, #tpu.memory_space<vmem>>) attributes {dimension_semantics = [#tpu.dimension_semantics<parallel>], iteration_bounds = array<i64: 1>, scalar_prefetch = 0 : i64, scratch_operands = 0 : i64, tpu.core_type = #tpu.core_type<tc>, window_params = [{transform_indices = @transform_0, window_bounds = array<i64: 2, 4>}, {transform_indices = @transform_1, window_bounds = array<i64: 4, 8, 128>}, {transform_indices = @transform_2, window_bounds = array<i64: 2, 8, 128>}]} {
    %c0 = arith.constant 0 : index
    %c0_0 = arith.constant 0 : index
    %c0_1 = arith.constant 0 : index
    %0 = vector.load %arg2[%c0, %c0_0, %c0_1] : memref<4x8x128xf32, #tpu.memory_space<vmem>>, vector<1x8x128xf32>
    %1 = vector.shape_cast %0 : vector<1x8x128xf32> to vector<8x128xf32>
    %c0_2 = arith.constant 0 : index
    %c0_3 = arith.constant 0 : index
    %2 = memref.load %arg1[%c0_2, %c0_3] : memref<2x4xf32, #tpu.memory_space<smem>>
    %3 = vector.broadcast %2 : f32 to vector<8x128xf32>
    %4 = arith.mulf %3, %1 : vector<8x128xf32>
    %c1 = arith.constant 1 : index
    %c0_4 = arith.constant 0 : index
    %5 = memref.load %arg1[%c1, %c0_4] : memref<2x4xf32, #tpu.memory_space<smem>>
    %6 = vector.broadcast %5 : f32 to vector<8x128xf32>
    %7 = arith.mulf %6, %1 : vector<8x128xf32>
    %c1_5 = arith.constant 1 : index
    %c0_6 = arith.constant 0 : index
    %c0_7 = arith.constant 0 : index
    %8 = vector.load %arg2[%c1_5, %c0_6, %c0_7] : memref<4x8x128xf32, #tpu.memory_space<vmem>>, vector<1x8x128xf32>
    %9 = vector.shape_cast %8 : vector<1x8x128xf32> to vector<8x128xf32>
    %c0_8 = arith.constant 0 : index
    %c1_9 = arith.constant 1 : index
    %10 = memref.load %arg1[%c0_8, %c1_9] : memref<2x4xf32, #tpu.memory_space<smem>>
    %11 = vector.broadcast %10 : f32 to vector<8x128xf32>
    %12 = arith.mulf %11, %9 : vector<8x128xf32>
    %13 = arith.addf %4, %12 : vector<8x128xf32>
    %c1_10 = arith.constant 1 : index
    %c1_11 = arith.constant 1 : index
    %14 = memref.load %arg1[%c1_10, %c1_11] : memref<2x4xf32, #tpu.memory_space<smem>>
    %15 = vector.broadcast %14 : f32 to vector<8x128xf32>
    %16 = arith.mulf %15, %9 : vector<8x128xf32>
    %17 = arith.addf %7, %16 : vector<8x128xf32>
    %c2 = arith.constant 2 : index
    %c0_12 = arith.constant 0 : index
    %c0_13 = arith.constant 0 : index
    %18 = vector.load %arg2[%c2, %c0_12, %c0_13] : memref<4x8x128xf32, #tpu.memory_space<vmem>>, vector<1x8x128xf32>
    %19 = vector.shape_cast %18 : vector<1x8x128xf32> to vector<8x128xf32>
    %c0_14 = arith.constant 0 : index
    %c2_15 = arith.constant 2 : index
    %20 = memref.load %arg1[%c0_14, %c2_15] : memref<2x4xf32, #tpu.memory_space<smem>>
    %21 = vector.broadcast %20 : f32 to vector<8x128xf32>
    %22 = arith.mulf %21, %19 : vector<8x128xf32>
    %23 = arith.addf %13, %22 : vector<8x128xf32>
    %c1_16 = arith.constant 1 : index
    %c2_17 = arith.constant 2 : index
    %24 = memref.load %arg1[%c1_16, %c2_17] : memref<2x4xf32, #tpu.memory_space<smem>>
    %25 = vector.broadcast %24 : f32 to vector<8x128xf32>
    %26 = arith.mulf %25, %19 : vector<8x128xf32>
    %27 = arith.addf %17, %26 : vector<8x128xf32>
    %c3 = arith.constant 3 : index
    %c0_18 = arith.constant 0 : index
    %c0_19 = arith.constant 0 : index
    %28 = vector.load %arg2[%c3, %c0_18, %c0_19] : memref<4x8x128xf32, #tpu.memory_space<vmem>>, vector<1x8x128xf32>
    %29 = vector.shape_cast %28 : vector<1x8x128xf32> to vector<8x128xf32>
    %c0_20 = arith.constant 0 : index
    %c3_21 = arith.constant 3 : index
    %30 = memref.load %arg1[%c0_20, %c3_21] : memref<2x4xf32, #tpu.memory_space<smem>>
    %31 = vector.broadcast %30 : f32 to vector<8x128xf32>
    %32 = arith.mulf %31, %29 : vector<8x128xf32>
    %33 = arith.addf %23, %32 : vector<8x128xf32>
    %c1_22 = arith.constant 1 : index
    %c3_23 = arith.constant 3 : index
    %34 = memref.load %arg1[%c1_22, %c3_23] : memref<2x4xf32, #tpu.memory_space<smem>>
    %35 = vector.broadcast %34 : f32 to vector<8x128xf32>
    %36 = arith.mulf %35, %29 : vector<8x128xf32>
    %37 = arith.addf %27, %36 : vector<8x128xf32>
    %c0_24 = arith.constant 0 : index
    %c0_25 = arith.constant 0 : index
    %c0_26 = arith.constant 0 : index
    %38 = vector.load %arg3[%c0_24, %c0_25, %c0_26] : memref<2x8x128xf32, #tpu.memory_space<vmem>>, vector<1x8x128xf32>
    %39 = vector.shape_cast %38 : vector<1x8x128xf32> to vector<8x128xf32>
    %40 = vector.shape_cast %33 : vector<8x128xf32> to vector<1x8x128xf32>
    tpu.vector_store %arg3[%c0_24, %c0_25, %c0_26], %40 {strides = array<i32>} : memref<2x8x128xf32, #tpu.memory_space<vmem>>, vector<1x8x128xf32>,
    %c1_27 = arith.constant 1 : index
    %c0_28 = arith.constant 0 : index
    %c0_29 = arith.constant 0 : index
    %41 = vector.load %arg3[%c1_27, %c0_28, %c0_29] : memref<2x8x128xf32, #tpu.memory_space<vmem>>, vector<1x8x128xf32>
    %42 = vector.shape_cast %41 : vector<1x8x128xf32> to vector<8x128xf32>
    %43 = vector.shape_cast %37 : vector<8x128xf32> to vector<1x8x128xf32>
    tpu.vector_store %arg3[%c1_27, %c0_28, %c0_29], %43 {strides = array<i32>} : memref<2x8x128xf32, #tpu.memory_space<vmem>>, vector<1x8x128xf32>,
    return
  }
  func.func @transform_0(%arg0: i32) -> (i32, i32) {
    %c0_i32 = arith.constant 0 : i32
    %c0_i32_0 = arith.constant 0 : i32
    %c0_i32_1 = arith.constant 0 : i32
    return %c0_i32, %c0_i32_0 : i32, i32
  }
  func.func @transform_1(%arg0: i32) -> (i32, i32, i32) {
    %c0_i32 = arith.constant 0 : i32
    %c0_i32_0 = arith.constant 0 : i32
    %c0_i32_1 = arith.constant 0 : i32
    return %c0_i32, %arg0, %c0_i32_0 : i32, i32, i32
  }
  func.func @transform_2(%arg0: i32) -> (i32, i32, i32) {
    %c0_i32 = arith.constant 0 : i32
    %c0_i32_0 = arith.constant 0 : i32
    %c0_i32_1 = arith.constant 0 : i32
    return %c0_i32, %arg0, %c0_i32_0 : i32, i32, i32
  }
}

</mosaic_0001>

<llo_original>
// kernel: tpu_custom_call.1
$region0: #{tpu_custom_call.1}
  #allocation0 [shape = 'u32[]', space=smem, size = 0x4, offset = 0x4, fixed_abs, tag = 'smem constant byte address 0x4 - core index']
  #allocation1 [shape = 'u32[72,128]{1,0:T(1,128)}', space=vmem, size = 0x9000, scoped, tag = 'internal scratch']
  %s0 = inlined_call_operand.hbm [shape: f32[2,4], index: 0, kind: input, shape index: {}]
  %s1 = inlined_call_operand.hbm [shape: f32[4,8,128], index: 1, kind: input, shape index: {}]
  %s2 = inlined_call_operand.hbm [shape: f32[2,8,128], index: 2, kind: output, shape index: {}]
  %s3 = sld [smem:[#allocation0]]
  $region26: #{tpu_custom_call.1} parent=0
    _
  %s5 = ssub.s32 1, %s3
  %s6 = scalar_select 0, %s5, %s3
  $region1: #{tpu_custom_call.1} parent=0
    #allocation2 [shape = 'u8[1024]{0}', space=smem, size = 0x400, scoped, tag = 'input window, operand 0, single buffered']
    #allocation3 [shape = 's32[1]{0}', space=sflag, size = 0x4, scoped, tag = 'scoped memory for tpu_custom_call.1']
    #allocation4 [shape = 's32[1]{0}', space=sflag, size = 0x4, scoped, tag = 'scoped memory for tpu_custom_call.1']
    #allocation5 [shape = 's32[1]{0}', space=sflag, size = 0x4, scoped, tag = 'scoped memory for tpu_custom_call.1']
    #allocation6 [shape = 'u8[16384]{0}', space=vmem, size = 0x4000, scoped, tag = 'input window, operand 1, single buffered']
    #allocation7 [shape = 'u8[8192]{0}', space=vmem, size = 0x2000, scoped, tag = 'output window, operand 0, single buffered']
    %7 = vsyncpa [#allocation5], 0
    %8 = vsyncpa [#allocation3], 0
    %9 = vsyncpa [#allocation4], 0
    // Predicated region
    $region2: #{tpu_custom_call.1} parent=1 // pred_check
      _
    $region3: #{tpu_custom_call.1} parent=1 // pred_check_branch
      %11 = sbr.rel (0) target = $region5
    $region4: #{tpu_custom_call.1} parent=1 // pred_region
      %13 = vsyncadd [#allocation5], 0
      %s15 = sshll.u32 %s0, 4
      %s16 = int_to_ptr.hbm [resolvable:$true] %s15
      %18 = dma.hbm_to_smem %s16, 32, [#allocation2], [#allocation5]
    $region5: #{tpu_custom_call.1} parent=1 // pred_fallthru
      _
    // Predicated region
    $region6: #{tpu_custom_call.1} parent=1 // pred_check
      _
    $region7: #{tpu_custom_call.1} parent=1 // pred_check_branch
      %20 = sbr.rel (0) target = $region9
    $region8: #{tpu_custom_call.1} parent=1 // pred_region
      %22 = vsyncadd [#allocation3], 0
      %s23 = sshll.u32 %s1, 4
      %s24 = int_to_ptr.hbm [resolvable:$true] %s23
      %s25 = sshll.u32 [#allocation6], 4
      %s26 = int_to_ptr.vmem [resolvable:$true] %s25
      %31 = dma.hbm_to_vmem [thread:$0]  %s24, 512, %s26, [#allocation3], 128, 128, 8
    $region9: #{tpu_custom_call.1} parent=1 // pred_fallthru
      _
    // Predicated region
    $region10: #{tpu_custom_call.1} parent=1 // pred_check
      _
    $region11: #{tpu_custom_call.1} parent=1 // pred_check_branch
      %33 = sbr.rel (0) target = $region13
    $region12: #{tpu_custom_call.1} parent=1 // pred_region
      %35 = dma.done [#allocation5], 32
    $region13: #{tpu_custom_call.1} parent=1 // pred_fallthru
      _
    // Predicated region
    $region14: #{tpu_custom_call.1} parent=1 // pred_check
      _
    $region15: #{tpu_custom_call.1} parent=1 // pred_check_branch
      %37 = sbr.rel (0) target = $region17
    $region16: #{tpu_custom_call.1} parent=1 // pred_region
      %39 = dma.done [#allocation3], 512
    $region17: #{tpu_custom_call.1} parent=1 // pred_fallthru
      _
    %40 = sfence
    %v41 = vld [vmem:[#allocation6] sm:$0xff]
    %s42 = sld [smem:[#allocation2]]
    %v43 = vstv %s42
    %v44 = vmul.f32 %v43, %v41
    %s45 = sld [smem:[#allocation2 + $0x80]]
    %v46 = vstv %s45
    %v47 = vmul.f32 %v46, %v41
    %s48 = scalar_lea.vmem [#allocation6], 8
    %v49 = vld [vmem:[%s48] sm:$0xff]
    %s50 = sld [smem:[#allocation2 + $0x1]]
    %v51 = vstv %s50
    %v52 = vmul.f32 %v51, %v49
    %v53 = vadd.f32 %v44, %v52
    %s54 = sld [smem:[#allocation2 + $0x81]]
    %v55 = vstv %s54
    %v56 = vmul.f32 %v55, %v49
    %v57 = vadd.f32 %v47, %v56
    %s58 = scalar_lea.vmem [#allocation6], 16
    %v59 = vld [vmem:[%s58] sm:$0xff]
    %s60 = sld [smem:[#allocation2 + $0x2]]
    %v61 = vstv %s60
    %v62 = vmul.f32 %v61, %v59
    %v63 = vadd.f32 %v53, %v62
    %s64 = sld [smem:[#allocation2 + $0x82]]
    %v65 = vstv %s64
    %v66 = vmul.f32 %v65, %v59
    %v67 = vadd.f32 %v57, %v66
    %s68 = scalar_lea.vmem [#allocation6], 24
    %v69 = vld [vmem:[%s68] sm:$0xff]
    %s70 = sld [smem:[#allocation2 + $0x3]]
    %v71 = vstv %s70
    %v72 = vmul.f32 %v71, %v69
    %v73 = vadd.f32 %v63, %v72
    %s74 = sld [smem:[#allocation2 + $0x83]]
    %v75 = vstv %s74
    %v76 = vmul.f32 %v75, %v69
    %v77 = vadd.f32 %v67, %v76
    %78 = vst [vmem:[#allocation7] sm:$0xff] %v73
    %s79 = scalar_lea.vmem [#allocation7], 8
    %80 = vst [vmem:[%s79] sm:$0xff] %v77
    // Predicated region
    $region18: #{tpu_custom_call.1} parent=1 // pred_check
      _
    $region19: #{tpu_custom_call.1} parent=1 // pred_check_branch
      %82 = sbr.rel (0) target = $region21
    $region20: #{tpu_custom_call.1} parent=1 // pred_region
      %84 = vsyncadd [#allocation4], 0
      %s85 = sshll.u32 [#allocation7], 4
      %s86 = int_to_ptr.vmem [resolvable:$true] %s85
      %s87 = sshll.u32 %s2, 4
      %s88 = int_to_ptr.hbm [resolvable:$true] %s87
      %93 = dma.vmem_to_hbm [thread:$0]  %s86, 256, %s88, [#allocation4], 128, 128, 8
    $region21: #{tpu_custom_call.1} parent=1 // pred_fallthru
      _
    // Predicated region
    $region22: #{tpu_custom_call.1} parent=1 // pred_check
      _
    $region23: #{tpu_custom_call.1} parent=1 // pred_check_branch
      %95 = sbr.rel (0) target = $region25
    $region24: #{tpu_custom_call.1} parent=1 // pred_region
      %97 = dma.done [#allocation4], 256
    $region25: #{tpu_custom_call.1} parent=1 // pred_fallthru
      _
    %98 = vsyncpa [#allocation3], 1
    %99 = vsyncpa [#allocation4], 1
    %100 = vsyncpa [#allocation5], 1

</llo_original>
